<compile_context>
chip_gen: v7x
topology: tpu7x:2x2x1
jax: 0.10.0
libtpu: 0.0.40
codegen_flags: <defaults>
</compile_context>

<pallas_src>
import jax
import jax.numpy as jnp
from jax.experimental import pallas as pl
from jax.experimental.pallas import tpu as pltpu

_LANE = 128
_SUBLANE = 8


def _broadcast2_kernel(scalars_ref, gv_ref, bd_ref):
    """Write the two precomputed gate scalars into lane-dense output blocks.

    scalars_ref : SMEM (2,) f32 -- [soft gate value, forward binary decision]
    gv_ref      : VMEM (t_rows, cols) block of continuous gate values
    bd_ref      : VMEM (t_rows, cols) block of binary decisions
    """
    gv_ref[...] = jnp.full(gv_ref.shape, scalars_ref[0], dtype=gv_ref.dtype)
    bd_ref[...] = jnp.full(bd_ref.shape, scalars_ref[1], dtype=bd_ref.dtype)


def _broadcast1_kernel(scalars_ref, gv_ref):
    """Eval / non-STE mode: gate_values == binary_decisions, write once."""
    gv_ref[...] = jnp.full(gv_ref.shape, scalars_ref[0], dtype=gv_ref.dtype)


def _vmem_budget_bytes() -> int:
    """Generation-aware scoped-VMEM budget (v5e/v6e 128 MiB, v7x 64 MiB phys)."""
    try:
        cap = int(pltpu.get_tpu_info().vmem_capacity_bytes)
    except Exception:
        cap = 64 * 1024 * 1024  # conservative (v7x per-TC physical)
    # Stay well under physical and at/below the largest default scoped limit.
    return min(cap // 2, 32 * 1024 * 1024)


def _pick_row_tile(rows: int, max_block_bytes: int, bytes_per_elem: int) -> int:
    """Largest sublane-aligned row tile that divides `rows`, fits the byte
    budget, and leaves >= 2 grid steps when possible (v7x megacore)."""
    max_rows = max(_SUBLANE, max_block_bytes // (_LANE * bytes_per_elem))
    cap = min(max_rows, rows)
    if rows >= 2 * _SUBLANE:
        cap = min(cap, rows // 2)  # guarantee >= 2 parallel blocks
    cap -= cap % _SUBLANE
    for cand in range(cap, _SUBLANE - 1, -_SUBLANE):
        if rows % cand == 0:
            return cand
    return rows  # small / awkward row count: single full-extent block


def recomputation_gate_forward(hidden_states, gate_param, *,
                               temperature: float = 1.0,
                               use_straight_through: bool = True,
                               training: bool = True,
                               out_dtype=jnp.float32):
    """JAX/Pallas equivalent of RecomputationGate.forward (gate_type='global').

    Args:
      hidden_states: (B, S, H) array; only its shape is used (as in PyTorch).
      gate_param:    (1,) float array (the global gate logit).
    Returns:
      (gate_values, binary_decisions), each (B, S, 1) in `out_dtype`.
    """
    B, S, _H = hidden_states.shape
    total = B * S
    bytes_per_elem = jnp.dtype(out_dtype).itemsize

    # ---- O(1) scalar parameter math (plain JAX; nothing per-element) --------
    logit = gate_param.astype(jnp.float32).reshape(())
    gate_value = jax.nn.sigmoid(logit / jnp.float32(temperature))
    ste = bool(training) and bool(use_straight_through)
    if ste:
        hard = jnp.where(gate_value > 0.5, jnp.float32(1.0), jnp.float32(0.0))
        # Forward value == hard threshold (straight-through forward semantics).
        # TODO(synk): the STE backward (gradients of binary_decisions w.r.t.
        # gate_param) needs a jax.custom_vjp around the pallas_call; only the
        # forward pass is implemented here.
        binary_scalar = gate_value + jax.lax.stop_gradient(hard - gate_value)
    else:
        binary_scalar = gate_value
    n_out = 2 if ste else 1  # eval / non-STE: single output, shared

    # ---- Layout + tiling -----------------------------------------------------
    budget = _vmem_budget_bytes()
    if total % _LANE == 0:
        # Flattened lane+sublane-dense slab, independent of B.
        rows, cols = total // _LANE, _LANE
        max_block_bytes = budget // (4 * n_out)  # 2 bufs * n_out * block <= budget/2
        t_rows = _pick_row_tile(rows, max_block_bytes, bytes_per_elem)
    else:
        # Fallback for non-128-aligned B*S: one full-extent (B, S) block.
        # TODO(synk): very large non-aligned shapes could exceed VMEM here;
        # pad S up to 128 upstream if that ever matters.
        rows, cols = B, S
        t_rows = rows
    grid = (rows // t_rows,)
    block = (t_rows, cols)

    out_struct = jax.ShapeDtypeStruct((rows, cols), out_dtype)
    idx_map = lambda i, scalars: (i, 0)  # scalar-prefetch ref passed positionally

    if n_out == 2:
        kernel = _broadcast2_kernel
        out_shape = (out_struct, out_struct)
        out_specs = (pl.BlockSpec(block, idx_map), pl.BlockSpec(block, idx_map))
        scalars = jnp.stack([gate_value, binary_scalar]).astype(jnp.float32)
    else:
        kernel = _broadcast1_kernel
        out_shape = out_struct
        out_specs = pl.BlockSpec(block, idx_map)
        scalars = gate_value.reshape((1,)).astype(jnp.float32)

    outs = pl.pallas_call(
        kernel,
        out_shape=out_shape,
        grid_spec=pltpu.PrefetchScalarGridSpec(
            num_scalar_prefetch=1,
            grid=grid,
            in_specs=[],
            out_specs=out_specs,
        ),
        compiler_params=pltpu.CompilerParams(
            dimension_semantics=("parallel",),
            vmem_limit_bytes=budget,
        ),
    )(scalars)

    if n_out == 2:
        gv2d, bd2d = outs
        gate_values = gv2d.reshape(B, S, 1)        # free contiguous reshape
        binary_decisions = bd2d.reshape(B, S, 1)
    else:
        gate_values = outs.reshape(B, S, 1)
        binary_decisions = gate_values             # identical in eval mode
    return gate_values, binary_decisions

    # TODO(synk): gate_type='per_head' / 'per_token' rely on runtime parameter
    # resizing (resize_gate_param), which has no static-shape Pallas equivalent;
    # only the default 'global' gate is implemented.


if __name__ == "__main__":
    key = jax.random.PRNGKey(0)

    init_bias = 0.7
    temperature = 1.0
    gate_param = jnp.full((1,), init_bias, dtype=jnp.float32)

    def _reference(B, S, tr, ste):
        gv = jax.nn.sigmoid(jnp.full((B, S, 1), init_bias, jnp.float32)
                            / jnp.float32(temperature))
        bd = (gv > 0.5).astype(jnp.float32) if (tr and ste) else gv
        return gv, bd

    # Case 1: tiny non-128-aligned shape (fallback (B,S) layout), training + STE.
    B, S, H = 2, 8, 32
    hs = jax.random.normal(key, (B, S, H), dtype=jnp.float32)
    gv, bd = recomputation_gate_forward(hs, gate_param, temperature=temperature,
                                        use_straight_through=True, training=True)
    jax.block_until_ready((gv, bd))
    rgv, rbd = _reference(B, S, True, True)
    assert gv.shape == (B, S, 1) and bd.shape == (B, S, 1)
    assert jnp.allclose(gv, rgv, atol=1e-6)
    assert jnp.allclose(bd, rbd, atol=1e-6)

    # Case 2: lane-aligned flattened path, eval mode (single-output kernel,
    # gate_values and binary_decisions share one array).
    B2, S2, H2 = 2, 256, 32
    hs2 = jax.random.normal(key, (B2, S2, H2), dtype=jnp.float32)
    gv2, bd2 = recomputation_gate_forward(hs2, gate_param, temperature=temperature,
                                          use_straight_through=True, training=False)
    jax.block_until_ready((gv2, bd2))
    rgv2, rbd2 = _reference(B2, S2, False, True)
    assert gv2.shape == (B2, S2, 1) and bd2.shape == (B2, S2, 1)
    assert jnp.allclose(gv2, rgv2, atol=1e-6)
    assert jnp.allclose(bd2, rbd2, atol=1e-6)

    # Case 3: multi-tile flattened path (>= 2 parallel grid steps), training + STE.
    B3, S3, H3 = 4, 1024, 32
    hs3 = jax.random.normal(key, (B3, S3, H3), dtype=jnp.float32)
    gv3, bd3 = recomputation_gate_forward(hs3, gate_param, temperature=temperature,
                                          use_straight_through=True, training=True)
    jax.block_until_ready((gv3, bd3))
    rgv3, rbd3 = _reference(B3, S3, True, True)
    assert gv3.shape == (B3, S3, 1) and bd3.shape == (B3, S3, 1)
    assert jnp.allclose(gv3, rgv3, atol=1e-6)
    assert jnp.allclose(bd3, rbd3, atol=1e-6)

    print("KERNEL_OK")
</pallas_src>

<mosaic_0001>
module attributes {stable_mosaic.version = 11 : i64} {
  func.func @_broadcast2_kernel(%arg0: i32, %arg1: memref<2xf32, #tpu.memory_space<smem>>, %arg2: memref<2x8xf32, #tpu.memory_space<vmem>>, %arg3: memref<2x8xf32, #tpu.memory_space<vmem>>) attributes {dimension_semantics = [#tpu.dimension_semantics<parallel>], iteration_bounds = array<i64: 1>, scalar_prefetch = 1 : i64, scratch_operands = 0 : i64, tpu.core_type = #tpu.core_type<tc>, window_params = [{transform_indices = @transform_0, window_bounds = array<i64: 2, 8>}, {transform_indices = @transform_1, window_bounds = array<i64: 2, 8>}]} {
    %c0 = arith.constant 0 : index
    %0 = memref.load %arg1[%c0] : memref<2xf32, #tpu.memory_space<smem>>
    %1 = vector.broadcast %0 : f32 to vector<2x8xf32>
    %c0_0 = arith.constant 0 : index
    %c0_1 = arith.constant 0 : index
    %2 = vector.load %arg2[%c0_0, %c0_1] : memref<2x8xf32, #tpu.memory_space<vmem>>, vector<2x8xf32>
    tpu.vector_store %arg2[%c0_0, %c0_1], %1 {strides = array<i32>} : memref<2x8xf32, #tpu.memory_space<vmem>>, vector<2x8xf32>,
    %c1 = arith.constant 1 : index
    %3 = memref.load %arg1[%c1] : memref<2xf32, #tpu.memory_space<smem>>
    %4 = vector.broadcast %3 : f32 to vector<2x8xf32>
    %c0_2 = arith.constant 0 : index
    %c0_3 = arith.constant 0 : index
    %5 = vector.load %arg3[%c0_2, %c0_3] : memref<2x8xf32, #tpu.memory_space<vmem>>, vector<2x8xf32>
    tpu.vector_store %arg3[%c0_2, %c0_3], %4 {strides = array<i32>} : memref<2x8xf32, #tpu.memory_space<vmem>>, vector<2x8xf32>,
    return
  }
  func.func @transform_0(%arg0: i32, %arg1: memref<2xf32, #tpu.memory_space<smem>>) -> (i32, i32) {
    %c0_i32 = arith.constant 0 : i32
    %c0_i32_0 = arith.constant 0 : i32
    return %arg0, %c0_i32 : i32, i32
  }
  func.func @transform_1(%arg0: i32, %arg1: memref<2xf32, #tpu.memory_space<smem>>) -> (i32, i32) {
    %c0_i32 = arith.constant 0 : i32
    %c0_i32_0 = arith.constant 0 : i32
    return %arg0, %c0_i32 : i32, i32
  }
}

</mosaic_0001>

<llo_original>
// kernel: tpu_custom_call.1
$region0: #{tpu_custom_call.1}
  #allocation0 [shape = 'u32[]', space=smem, size = 0x4, offset = 0x4, fixed_abs, tag = 'smem constant byte address 0x4 - core index']
  #allocation1 [shape = 'u32[144,128]{1,0:T(1,128)}', space=vmem, size = 0x12000, scoped, tag = 'internal scratch']
  #allocation2 [shape = 's32[1]{0}', space=sflag, size = 0x4, scoped, tag = 'scoped memory for tpu_custom_call.1']
  #allocation3 [shape = 'u8[512]{0}', space=smem, size = 0x200, scoped, tag = 'prefetched SMEM operand 0']
  %s0 = inlined_call_operand.hbm [shape: f32[2], index: 0, kind: input, shape index: {}]
  %s1 = inlined_call_operand.hbm [shape: f32[2,8], index: 1, kind: output, shape index: {0}]
  %s2 = inlined_call_operand.hbm [shape: f32[2,8], index: 2, kind: output, shape index: {1}]
  %3 = xla_tuple %s1, %s2
  %s4 = sld [smem:[#allocation0]]
  $region18: #{tpu_custom_call.1} parent=0
    _
  %s6 = ssub.s32 1, %s4
  %s7 = scalar_select 0, %s6, %s4
  %9 = dma.hbm_to_smem %s0, 16, [#allocation3], [#allocation2]
  %10 = dma.done [#allocation2], 16
  %11 = sfence
  $region1: #{tpu_custom_call.1} parent=0
    #allocation4 [shape = 'u8[1024]{0}', space=vmem, size = 0x400, scoped, tag = 'output window, operand 0, single buffered']
    #allocation5 [shape = 's32[1]{0}', space=sflag, size = 0x4, scoped, tag = 'scoped memory for tpu_custom_call.1']
    #allocation6 [shape = 'u8[1024]{0}', space=vmem, size = 0x400, scoped, tag = 'output window, operand 1, single buffered']
    #allocation7 [shape = 's32[1]{0}', space=sflag, size = 0x4, scoped, tag = 'scoped memory for tpu_custom_call.1']
    %12 = vsyncpa [#allocation5], 0
    %13 = vsyncpa [#allocation7], 0
    %s14 = sld [smem:[#allocation3]]
    %v15 = vstv %s14
    %vm16 = vcmask 58368
    %17 = vst.msk [vmem:[#allocation4] sm:$0x3] %vm16, %v15
    %s18 = sld [smem:[#allocation3 + $0x1]]
    %v19 = vstv %s18
    %20 = vst.msk [vmem:[#allocation6] sm:$0x3] %vm16, %v19
    // Predicated region
    $region2: #{tpu_custom_call.1} parent=1 // pred_check
      _
    $region3: #{tpu_custom_call.1} parent=1 // pred_check_branch
      %22 = sbr.rel (0) target = $region5
    $region4: #{tpu_custom_call.1} parent=1 // pred_region
      %s24 = ssub.s32 32, 32
      %25 = vsyncadd [#allocation5], %s24
      %s27 = sshll.u32 [#allocation4], 4
      %s28 = int_to_ptr.vmem [resolvable:$true] %s27
      %30 = dma.vmem_to_hbm [thread:$0]  %s28, 32, %s1, [#allocation5]
    $region5: #{tpu_custom_call.1} parent=1 // pred_fallthru
      _
    // Predicated region
    $region6: #{tpu_custom_call.1} parent=1 // pred_check
      _
    $region7: #{tpu_custom_call.1} parent=1 // pred_check_branch
      %32 = sbr.rel (0) target = $region9
    $region8: #{tpu_custom_call.1} parent=1 // pred_region
      %s34 = ssub.s32 32, 32
      %35 = vsyncadd [#allocation7], %s34
      %s37 = sshll.u32 [#allocation6], 4
      %s38 = int_to_ptr.vmem [resolvable:$true] %s37
      %40 = dma.vmem_to_hbm [thread:$0]  %s38, 32, %s2, [#allocation7]
    $region9: #{tpu_custom_call.1} parent=1 // pred_fallthru
      _
    // Predicated region
    $region10: #{tpu_custom_call.1} parent=1 // pred_check
      _
    $region11: #{tpu_custom_call.1} parent=1 // pred_check_branch
      %42 = sbr.rel (0) target = $region13
    $region12: #{tpu_custom_call.1} parent=1 // pred_region
      %43 = dma.done [#allocation5], 32
    $region13: #{tpu_custom_call.1} parent=1 // pred_fallthru
      _
    // Predicated region
    $region14: #{tpu_custom_call.1} parent=1 // pred_check
      _
    $region15: #{tpu_custom_call.1} parent=1 // pred_check_branch
      %45 = sbr.rel (0) target = $region17
    $region16: #{tpu_custom_call.1} parent=1 // pred_region
      %46 = dma.done [#allocation7], 32
    $region17: #{tpu_custom_call.1} parent=1 // pred_fallthru
      _
    %47 = vsyncpa [#allocation5], 1
    %48 = vsyncpa [#allocation7], 1

</llo_original>
